<compile_context>
chip_gen: v5e
topology: v5e:2x2
jax: 0.10.0
libtpu: 0.0.40
codegen_flags: <defaults>
</compile_context>

<pallas_src>
import math

import numpy as np
import jax
import jax.numpy as jnp
from jax.experimental import pallas as pl
from jax.experimental.pallas import tpu as pltpu

# ---------------------------------------------------------------- config ----
NUM_DIMS = 16          # region_graph.get_num_items()
DEPTH = 2              # leaf regions of size NUM_DIMS / 2**DEPTH = 4
NUM_REPS = 2           # repetitions of the recursive split
NUM_GAUSS = 8          # args.num_gauss  (leaf vector size)
NUM_SUMS = 8           # args.num_sums   (inner sum vector size)
NUM_CLASSES = 4        # RatSpn(num_classes=...)
BATCH = 2

GAUSS_MIN_SIGMA = 0.1  # args.gauss_min_sigma
GAUSS_MAX_SIGMA = 1.0  # args.gauss_max_sigma
LOG_2PI = math.log(2.0 * math.pi)


# -------------------------------------------------------- region graph ------
def build_leaf_scopes():
    """Leaf regions (sorted index lists), rep-major order, all distinct. -> [NR, L] int array."""
    num_leaf = 2 ** DEPTH
    leaf_size = NUM_DIMS // num_leaf
    perms = [
        list(range(NUM_DIMS)),                                                   # rep 0: contiguous
        [i + leaf_size * j for i in range(leaf_size) for j in range(num_leaf)],  # rep 1: strided
    ]
    assert len(perms) == NUM_REPS
    scopes = []
    for perm in perms:
        for c in range(num_leaf):
            scopes.append(tuple(sorted(perm[c * leaf_size:(c + 1) * leaf_size])))
    assert len(set(scopes)) == len(scopes)
    return np.asarray(scopes, dtype=np.int32)


LEAF_SCOPES_NP = build_leaf_scopes()
NR = LEAF_SCOPES_NP.shape[0]            # 8 leaf vectors
L = LEAF_SCOPES_NP.shape[1]             # 4 dims per leaf
NB1 = NR // 2                           # 4 inner product/sum blocks
NB2 = NB1 // 2                          # 2 repetitions feeding the root (== NUM_REPS)
PROD1_BLK = NUM_GAUSS * NUM_GAUSS       # 64 products per inner block
PROD2_BLK = NUM_SUMS * NUM_SUMS         # 64 products per root block
WIDTH1 = NB1 * PROD1_BLK                # 256 lane-dense level-1 products
WIDTH2 = NB2 * PROD2_BLK                # 128 lane-dense root inputs
SUM1_W = NB1 * NUM_SUMS                 # 32 inner sum outputs
ROOT_W = NB2 * NUM_CLASSES              # 8 per-rep root partials


# --------------------------------------------- static (numpy) index helpers --
def _build_static_index_maps():
    # Leaf scatter: (r, l, k)  ->  row = scope[r, l], col = r*K + k   in a [D, NR*K] matrix.
    r_i, l_i, k_i = np.meshgrid(np.arange(NR), np.arange(L), np.arange(NUM_GAUSS), indexing="ij")
    leaf_rows = LEAF_SCOPES_NP[r_i, l_i].reshape(-1)
    leaf_cols = (r_i * NUM_GAUSS + k_i).reshape(-1)

    # Level-1 products: column j = p*K*K + k2*K + k1  sums leaf columns
    #   idx1 = (2p)*K + k1   (vector1, k1 axis)   idx2 = (2p+1)*K + k2  (vector2, k2 axis)
    p_i, k2_i, k1_i = np.meshgrid(np.arange(NB1), np.arange(NUM_GAUSS), np.arange(NUM_GAUSS),
                                  indexing="ij")
    prod1_idx1 = ((2 * p_i) * NUM_GAUSS + k1_i).reshape(-1)
    prod1_idx2 = ((2 * p_i + 1) * NUM_GAUSS + k2_i).reshape(-1)

    # Level-2 products as a 0/1 expansion matrix P2: [NB1*S, NB2*S*S]
    #   column j = rep*S*S + s2*S + s1  picks sums1 columns (2rep)*S+s1 and (2rep+1)*S+s2.
    rep_i, s2_i, s1_i = np.meshgrid(np.arange(NB2), np.arange(NUM_SUMS), np.arange(NUM_SUMS),
                                    indexing="ij")
    i1 = ((2 * rep_i) * NUM_SUMS + s1_i).reshape(-1)
    i2 = ((2 * rep_i + 1) * NUM_SUMS + s2_i).reshape(-1)
    p2 = np.zeros((SUM1_W, WIDTH2), np.float32)
    p2[i1, np.arange(WIDTH2)] = 1.0
    p2[i2, np.arange(WIDTH2)] = 1.0
    return leaf_rows, leaf_cols, prod1_idx1, prod1_idx2, p2


LEAF_ROWS, LEAF_COLS, PROD1_IDX1, PROD1_IDX2, P2_NP = _build_static_index_maps()


# ----------------------------------------------- MXU f32 precision (probe) --
def _probe_highest_precision():
    """Use Precision.HIGHEST for in-kernel f32 dots if the Mosaic lowering accepts it."""
    def k(a_ref, b_ref, o_ref):
        o_ref[...] = jnp.dot(a_ref[...], b_ref[...],
                             preferred_element_type=jnp.float32,
                             precision=jax.lax.Precision.HIGHEST)
    try:
        f = pl.pallas_call(k, out_shape=jax.ShapeDtypeStruct((8, 128), jnp.float32))
        jax.jit(f).lower(jnp.zeros((8, 128), jnp.float32),
                         jnp.zeros((128, 128), jnp.float32)).compile()
        return jax.lax.Precision.HIGHEST
    except Exception:
        return None


_DOT_PRECISION = _probe_highest_precision()


def _dot(a, b):
    return jnp.dot(a, b, preferred_element_type=jnp.float32, precision=_DOT_PRECISION)


# ------------------------------------------------------------- kernel -------
def _blockwise_logsum_matmul(vals, w_bd, nblk, blk, out_blk):
    """SumVector layer as stabilized exp + ONE block-diagonal MXU matmul.

    vals : [BT, nblk*blk]          log-domain product values, block-major lane layout
    w_bd : [nblk*blk, nblk*out_blk] block-diagonal softmax'd (exp-domain) sum weights
    -> [BT, nblk*out_blk]          log-domain sum outputs (logsumexp per block).
    """
    bt = vals.shape[0]
    cms = [jnp.max(vals[:, p * blk:(p + 1) * blk], axis=1, keepdims=True) for p in range(nblk)]
    cm_in = jnp.concatenate([jnp.broadcast_to(c, (bt, blk)) for c in cms], axis=1)
    e = jnp.exp(vals - cm_in)                          # max entry per block is exactly 1
    lin = _dot(e, w_bd)                                # [BT, nblk*out_blk]
    cm_out = jnp.concatenate([jnp.broadcast_to(c, (bt, out_blk)) for c in cms], axis=1)
    return jnp.log(lin) + cm_out


def fused_rat_spn_kernel(x_ref, ap1_ref, bp1_ref, cp1_ref, w1bd_ref, p2_ref, wrbd_ref, out_ref):
    """Entire RAT-SPN forward for one batch tile.

    x_ref    : [BT, D]            raw inputs (no gather needed; scopes folded into AP1/BP1)
    ap1_ref  : [D, 256]           x-coefficients, leaf layer + level-1 products folded
    bp1_ref  : [D, 256]           x^2-coefficients
    cp1_ref  : [1, 256]           constant terms (log sigma, log 2pi, mu^2/sigma)
    w1bd_ref : [256, 32]          block-diagonal softmax'd inner sum weights
    p2_ref   : [32, 128]          0/1 expansion matrix for the top products
    wrbd_ref : [128, 8]           block-diagonal (per-rep) jointly-softmax'd root weights
    out_ref  : [BT, C]            class log-scores
    """
    x = x_ref[...]
    xsq = x * x

    # Layers 0+1 fused: Gaussian leaf log-probs + log-domain cross-products == 2 matmuls.
    prod1 = _dot(x, ap1_ref[...]) - _dot(xsq, bp1_ref[...]) + cp1_ref[...]        # [BT, 256]

    # Layer 2: the 4 inner SumVectors as one block-diagonal matmul (logsumexp per block).
    sums1 = _blockwise_logsum_matmul(prod1, w1bd_ref[...], NB1, PROD1_BLK, NUM_SUMS)  # [BT, 32]

    # Layer 3: top ProductVectors (one per repetition) == matmul with a 0/1 expansion matrix.
    prod2 = _dot(sums1, p2_ref[...])                                              # [BT, 128]

    # Layer 4: root SumVector (weights jointly normalized over both reps), stabilized per rep.
    rootlog = _blockwise_logsum_matmul(prod2, wrbd_ref[...], NB2, PROD2_BLK, NUM_CLASSES)  # [BT, 8]

    # Cross-repetition logsumexp on the lane-contiguous [BT, 2*C] slab -> [BT, C].
    a = rootlog[:, :NUM_CLASSES]
    b = rootlog[:, NUM_CLASSES:]
    m = jnp.maximum(a, b)
    out_ref[...] = jnp.log(jnp.exp(a - m) + jnp.exp(b - m)) + m


# ---------------------------------------------------------- wrapper / prep --
def _round_up(v, m):
    return ((v + m - 1) // m) * m


def _prepare_kernel_constants(params):
    """Batch-independent parameter math, hoisted out of the kernel (per perf feedback)."""
    means = params["leaf_means"]                       # [NR, L, K]
    sigp = params["leaf_sigma_params"]                 # [NR, L, K]
    sigma = GAUSS_MIN_SIGMA + (GAUSS_MAX_SIGMA - GAUSS_MIN_SIGMA) * jax.nn.sigmoid(sigp)
    inv_sigma = 1.0 / sigma

    a_coef = means * inv_sigma                         # coefficient of x
    b_coef = 0.5 * inv_sigma                           # coefficient of x^2
    c_leaf = jnp.sum(-0.5 * jnp.log(sigma) - 0.5 * LOG_2PI
                     - 0.5 * means * means * inv_sigma, axis=1)        # [NR, K]

    # Scatter per-leaf params into dense [D, NR*K] matmul operands (scopes are static).
    a_full = jnp.zeros((NUM_DIMS, NR * NUM_GAUSS), jnp.float32
                       ).at[LEAF_ROWS, LEAF_COLS].set(a_coef.reshape(-1))
    b_full = jnp.zeros((NUM_DIMS, NR * NUM_GAUSS), jnp.float32
                       ).at[LEAF_ROWS, LEAF_COLS].set(b_coef.reshape(-1))
    c_flat = c_leaf.reshape(-1)

    # Fold the level-1 ProductVector (log-domain outer add == column duplication) in.
    ap1 = a_full[:, PROD1_IDX1] + a_full[:, PROD1_IDX2]                # [D, 256]
    bp1 = b_full[:, PROD1_IDX1] + b_full[:, PROD1_IDX2]                # [D, 256]
    cp1 = (c_flat[PROD1_IDX1] + c_flat[PROD1_IDX2])[None, :]           # [1, 256]

    # Exp-domain (softmax'd) sum weights, assembled block-diagonally.
    w1_exp = jax.nn.softmax(params["sum1_params"], axis=1)             # [NB1, 64, S]
    w1bd = jax.scipy.linalg.block_diag(*[w1_exp[p] for p in range(NB1)])      # [256, 32]

    wr_exp = jax.nn.softmax(params["root_params"], axis=0)             # [128, C] (joint norm)
    wrbd = jax.scipy.linalg.block_diag(
        *[wr_exp[rep * PROD2_BLK:(rep + 1) * PROD2_BLK] for rep in range(NB2)])  # [128, 8]

    p2 = jnp.asarray(P2_NP)                                            # [32, 128]
    return ap1, bp1, cp1, w1bd, p2, wrbd


def rat_spn_forward(x, params):
    """Fused Pallas forward. x: [batch, NUM_DIMS] -> [batch, NUM_CLASSES] (log-space)."""
    # TODO(synk): marginalized-mask path (marginalized != None) not wired into the leaf math.
    # TODO(synk): linear_sum_weights=True branch not implemented (defaults use log-domain sums).
    b = x.shape[0]
    ap1, bp1, cp1, w1bd, p2, wrbd = _prepare_kernel_constants(params)

    # 1-D batch grid, sublane-aligned tile; weights get constant index maps so they stay
    # VMEM-resident across grid steps (blocked BlockSpecs are VMEM-backed by default).
    bt = 256 if b >= 256 else _round_up(b, 8)
    b_pad = _round_up(b, bt)
    x_pad = jnp.pad(x, ((0, b_pad - b), (0, 0))) if b_pad != b else x

    out = pl.pallas_call(
        fused_rat_spn_kernel,
        out_shape=jax.ShapeDtypeStruct((b_pad, NUM_CLASSES), jnp.float32),
        grid=(b_pad // bt,),
        in_specs=[
            pl.BlockSpec((bt, NUM_DIMS), lambda i: (i, 0)),
            pl.BlockSpec((NUM_DIMS, WIDTH1), lambda i: (0, 0)),
            pl.BlockSpec((NUM_DIMS, WIDTH1), lambda i: (0, 0)),
            pl.BlockSpec((1, WIDTH1), lambda i: (0, 0)),
            pl.BlockSpec((WIDTH1, SUM1_W), lambda i: (0, 0)),
            pl.BlockSpec((SUM1_W, WIDTH2), lambda i: (0, 0)),
            pl.BlockSpec((WIDTH2, ROOT_W), lambda i: (0, 0)),
        ],
        out_specs=pl.BlockSpec((bt, NUM_CLASSES), lambda i: (i, 0)),
        compiler_params=pltpu.CompilerParams(dimension_semantics=("parallel",)),
    )(x_pad, ap1, bp1, cp1, w1bd, p2, wrbd)
    return out[:b]


rat_spn_forward_jit = jax.jit(rat_spn_forward)


# ------------------------------------------------------------ init params ---
def init_params(key):
    k1, k2, k3, k4 = jax.random.split(key, 4)
    # GaussVector.init_params: normal(mean=gauss_mean_of_means=0, std=0.1)
    means = 0.1 * jax.random.normal(k1, (NR, L, NUM_GAUSS), jnp.float32)
    sigp = 0.1 * jax.random.normal(k2, (NR, L, NUM_GAUSS), jnp.float32)
    # SumVector params: normal(std=0.5)
    sum1 = 0.5 * jax.random.normal(k3, (NB1, NUM_GAUSS * NUM_GAUSS, NUM_SUMS), jnp.float32)
    rootp = 0.5 * jax.random.normal(k4, (NB2 * NUM_SUMS * NUM_SUMS, NUM_CLASSES), jnp.float32)
    return dict(leaf_means=means, leaf_sigma_params=sigp, sum1_params=sum1, root_params=rootp)


# ------------------------------------------------------ pure-JAX reference --
def rat_spn_reference(x, params):
    leaf_outs = []
    for r in range(NR):
        xl = x[:, LEAF_SCOPES_NP[r]][:, :, None]
        mu = params["leaf_means"][r]
        sp = params["leaf_sigma_params"][r]
        sigma = GAUSS_MIN_SIGMA + (GAUSS_MAX_SIGMA - GAUSS_MIN_SIGMA) * jax.nn.sigmoid(sp)
        logp = -0.5 * (xl - mu) ** 2 / sigma - 0.5 * jnp.log(sigma) - 0.5 * LOG_2PI
        leaf_outs.append(jnp.sum(logp, axis=1))

    def prod(a, b):
        return (a[:, None, :] + b[:, :, None]).reshape(a.shape[0], -1)

    def sumv(p, w):
        lw = jax.nn.log_softmax(w, axis=0)
        return jax.scipy.special.logsumexp(p[:, :, None] + lw[None], axis=1)

    prods1 = [prod(leaf_outs[2 * i], leaf_outs[2 * i + 1]) for i in range(len(leaf_outs) // 2)]
    sums1 = [sumv(prods1[i], params["sum1_params"][i]) for i in range(len(prods1))]
    prods2 = [prod(sums1[2 * i], sums1[2 * i + 1]) for i in range(len(sums1) // 2)]
    root_in = jnp.concatenate(prods2, axis=1)
    return sumv(root_in, params["root_params"])


# -------------------------------------------------------------------- main --
if __name__ == "__main__":
    key = jax.random.PRNGKey(0)
    kx, kp = jax.random.split(key)
    x = jax.random.normal(kx, (BATCH, NUM_DIMS), dtype=jnp.float32)
    params = init_params(kp)

    out = jax.block_until_ready(rat_spn_forward_jit(x, params))
    assert out.shape == (BATCH, NUM_CLASSES), out.shape

    ref = rat_spn_reference(x, params)
    if not jnp.allclose(out, ref, rtol=1e-4, atol=1e-4):
        raise AssertionError(f"mismatch: pallas={out}, ref={ref}")

    print("KERNEL_OK")
</pallas_src>

<mosaic_0001>
module attributes {stable_mosaic.version = 11 : i64} {
  func.func @fused_rat_spn_kernel(%arg0: i32, %arg1: memref<8x16xf32, #tpu.memory_space<vmem>>, %arg2: memref<16x256xf32, #tpu.memory_space<vmem>>, %arg3: memref<16x256xf32, #tpu.memory_space<vmem>>, %arg4: memref<1x256xf32, #tpu.memory_space<vmem>>, %arg5: memref<256x32xf32, #tpu.memory_space<vmem>>, %arg6: memref<32x128xf32, #tpu.memory_space<vmem>>, %arg7: memref<128x8xf32, #tpu.memory_space<vmem>>, %arg8: memref<8x4xf32, #tpu.memory_space<vmem>>) attributes {dimension_semantics = [#tpu.dimension_semantics<parallel>], iteration_bounds = array<i64: 1>, scalar_prefetch = 0 : i64, scratch_operands = 0 : i64, tpu.core_type = #tpu.core_type<tc>, window_params = [{transform_indices = @transform_0, window_bounds = array<i64: 8, 16>}, {pipeline_mode = #tpu.pipeline_mode<synchronous>, transform_indices = @transform_1, window_bounds = array<i64: 16, 256>}, {pipeline_mode = #tpu.pipeline_mode<synchronous>, transform_indices = @transform_2, window_bounds = array<i64: 16, 256>}, {pipeline_mode = #tpu.pipeline_mode<synchronous>, transform_indices = @transform_3, window_bounds = array<i64: 1, 256>}, {pipeline_mode = #tpu.pipeline_mode<synchronous>, transform_indices = @transform_4, window_bounds = array<i64: 256, 32>}, {pipeline_mode = #tpu.pipeline_mode<synchronous>, transform_indices = @transform_5, window_bounds = array<i64: 32, 128>}, {pipeline_mode = #tpu.pipeline_mode<synchronous>, transform_indices = @transform_6, window_bounds = array<i64: 128, 8>}, {transform_indices = @transform_7, window_bounds = array<i64: 8, 4>}]} {
    %c0 = arith.constant 0 : index
    %c0_0 = arith.constant 0 : index
    %0 = vector.load %arg1[%c0, %c0_0] : memref<8x16xf32, #tpu.memory_space<vmem>>, vector<8x16xf32>
    %1 = arith.mulf %0, %0 : vector<8x16xf32>
    %c0_1 = arith.constant 0 : index
    %c0_2 = arith.constant 0 : index
    %2 = vector.load %arg2[%c0_1, %c0_2] : memref<16x256xf32, #tpu.memory_space<vmem>>, vector<16x256xf32>
    %cst = arith.constant dense<0.000000e+00> : vector<8x256xf32>
    %3 = tpu.matmul %0, %2, %cst {dimension_numbers = #tpu.dot_dimension_numbers<[1], [0], [0], [1], [0, 0, 1, 1], [], []>} : vector<8x16xf32>, vector<16x256xf32>, vector<8x256xf32> -> vector<8x256xf32>
    %c0_3 = arith.constant 0 : index
    %c0_4 = arith.constant 0 : index
    %4 = vector.load %arg3[%c0_3, %c0_4] : memref<16x256xf32, #tpu.memory_space<vmem>>, vector<16x256xf32>
    %cst_5 = arith.constant dense<0.000000e+00> : vector<8x256xf32>
    %5 = tpu.matmul %1, %4, %cst_5 {dimension_numbers = #tpu.dot_dimension_numbers<[1], [0], [0], [1], [0, 0, 1, 1], [], []>} : vector<8x16xf32>, vector<16x256xf32>, vector<8x256xf32> -> vector<8x256xf32>
    %6 = arith.subf %3, %5 : vector<8x256xf32>
    %c0_6 = arith.constant 0 : index
    %c0_7 = arith.constant 0 : index
    %7 = vector.load %arg4[%c0_6, %c0_7] : memref<1x256xf32, #tpu.memory_space<vmem>>, vector<1x256xf32>
    %8 = vector.broadcast %7 : vector<1x256xf32> to vector<8x256xf32>
    %9 = arith.addf %6, %8 : vector<8x256xf32>
    %c0_8 = arith.constant 0 : index
    %c0_9 = arith.constant 0 : index
    %10 = vector.load %arg5[%c0_8, %c0_9] : memref<256x32xf32, #tpu.memory_space<vmem>>, vector<256x32xf32>
    %11 = vector.extract_strided_slice %9 {offsets = [0, 0], sizes = [8, 64], strides = [1, 1]} : vector<8x256xf32> to vector<8x64xf32>
    %cst_10 = arith.constant dense<0xFF800000> : vector<8xf32>
    %12 = vector.multi_reduction <maximumf>, %11, %cst_10 [1] : vector<8x64xf32> to vector<8xf32>
    %13 = vector.shape_cast %12 : vector<8xf32> to vector<8x1xf32>
    %14 = vector.extract_strided_slice %9 {offsets = [0, 64], sizes = [8, 64], strides = [1, 1]} : vector<8x256xf32> to vector<8x64xf32>
    %cst_11 = arith.constant dense<0xFF800000> : vector<8xf32>
    %15 = vector.multi_reduction <maximumf>, %14, %cst_11 [1] : vector<8x64xf32> to vector<8xf32>
    %16 = vector.shape_cast %15 : vector<8xf32> to vector<8x1xf32>
    %17 = vector.extract_strided_slice %9 {offsets = [0, 128], sizes = [8, 64], strides = [1, 1]} : vector<8x256xf32> to vector<8x64xf32>
    %cst_12 = arith.constant dense<0xFF800000> : vector<8xf32>
    %18 = vector.multi_reduction <maximumf>, %17, %cst_12 [1] : vector<8x64xf32> to vector<8xf32>
    %19 = vector.shape_cast %18 : vector<8xf32> to vector<8x1xf32>
    %20 = vector.extract_strided_slice %9 {offsets = [0, 192], sizes = [8, 64], strides = [1, 1]} : vector<8x256xf32> to vector<8x64xf32>
    %cst_13 = arith.constant dense<0xFF800000> : vector<8xf32>
    %21 = vector.multi_reduction <maximumf>, %20, %cst_13 [1] : vector<8x64xf32> to vector<8xf32>
    %22 = vector.shape_cast %21 : vector<8xf32> to vector<8x1xf32>
    %23 = vector.shape_cast %13 : vector<8x1xf32> to vector<8x1xf32>
    %24 = vector.broadcast %23 : vector<8x1xf32> to vector<8x64xf32>
    %25 = vector.shape_cast %16 : vector<8x1xf32> to vector<8x1xf32>
    %26 = vector.broadcast %25 : vector<8x1xf32> to vector<8x64xf32>
    %27 = vector.shape_cast %19 : vector<8x1xf32> to vector<8x1xf32>
    %28 = vector.broadcast %27 : vector<8x1xf32> to vector<8x64xf32>
    %29 = vector.shape_cast %22 : vector<8x1xf32> to vector<8x1xf32>
    %30 = vector.broadcast %29 : vector<8x1xf32> to vector<8x64xf32>
    %31 = tpu.concatenate %24, %26, %28, %30 in 1 : vector<8x64xf32>, vector<8x64xf32>, vector<8x64xf32>, vector<8x64xf32> -> vector<8x256xf32>
    %32 = arith.subf %9, %31 : vector<8x256xf32>
    %33 = math.exp %32 : vector<8x256xf32>
    %cst_14 = arith.constant dense<0.000000e+00> : vector<8x32xf32>
    %34 = tpu.matmul %33, %10, %cst_14 {dimension_numbers = #tpu.dot_dimension_numbers<[1], [0], [0], [1], [0, 0, 1, 1], [], []>} : vector<8x256xf32>, vector<256x32xf32>, vector<8x32xf32> -> vector<8x32xf32>
    %35 = vector.shape_cast %13 : vector<8x1xf32> to vector<8x1xf32>
    %36 = vector.broadcast %35 : vector<8x1xf32> to vector<8x8xf32>
    %37 = vector.shape_cast %16 : vector<8x1xf32> to vector<8x1xf32>
    %38 = vector.broadcast %37 : vector<8x1xf32> to vector<8x8xf32>
    %39 = vector.shape_cast %19 : vector<8x1xf32> to vector<8x1xf32>
    %40 = vector.broadcast %39 : vector<8x1xf32> to vector<8x8xf32>
    %41 = vector.shape_cast %22 : vector<8x1xf32> to vector<8x1xf32>
    %42 = vector.broadcast %41 : vector<8x1xf32> to vector<8x8xf32>
    %43 = tpu.concatenate %36, %38, %40, %42 in 1 : vector<8x8xf32>, vector<8x8xf32>, vector<8x8xf32>, vector<8x8xf32> -> vector<8x32xf32>
    %44 = math.log %34 : vector<8x32xf32>
    %45 = arith.addf %44, %43 : vector<8x32xf32>
    %c0_15 = arith.constant 0 : index
    %c0_16 = arith.constant 0 : index
    %46 = vector.load %arg6[%c0_15, %c0_16] : memref<32x128xf32, #tpu.memory_space<vmem>>, vector<32x128xf32>
    %cst_17 = arith.constant dense<0.000000e+00> : vector<8x128xf32>
    %47 = tpu.matmul %45, %46, %cst_17 {dimension_numbers = #tpu.dot_dimension_numbers<[1], [0], [0], [1], [0, 0, 1, 1], [], []>} : vector<8x32xf32>, vector<32x128xf32>, vector<8x128xf32> -> vector<8x128xf32>
    %c0_18 = arith.constant 0 : index
    %c0_19 = arith.constant 0 : index
    %48 = vector.load %arg7[%c0_18, %c0_19] : memref<128x8xf32, #tpu.memory_space<vmem>>, vector<128x8xf32>
    %49 = vector.extract_strided_slice %47 {offsets = [0, 0], sizes = [8, 64], strides = [1, 1]} : vector<8x128xf32> to vector<8x64xf32>
    %cst_20 = arith.constant dense<0xFF800000> : vector<8xf32>
    %50 = vector.multi_reduction <maximumf>, %49, %cst_20 [1] : vector<8x64xf32> to vector<8xf32>
    %51 = vector.shape_cast %50 : vector<8xf32> to vector<8x1xf32>
    %52 = vector.extract_strided_slice %47 {offsets = [0, 64], sizes = [8, 64], strides = [1, 1]} : vector<8x128xf32> to vector<8x64xf32>
    %cst_21 = arith.constant dense<0xFF800000> : vector<8xf32>
    %53 = vector.multi_reduction <maximumf>, %52, %cst_21 [1] : vector<8x64xf32> to vector<8xf32>
    %54 = vector.shape_cast %53 : vector<8xf32> to vector<8x1xf32>
    %55 = vector.shape_cast %51 : vector<8x1xf32> to vector<8x1xf32>
    %56 = vector.broadcast %55 : vector<8x1xf32> to vector<8x64xf32>
    %57 = vector.shape_cast %54 : vector<8x1xf32> to vector<8x1xf32>
    %58 = vector.broadcast %57 : vector<8x1xf32> to vector<8x64xf32>
    %59 = tpu.concatenate %56, %58 in 1 : vector<8x64xf32>, vector<8x64xf32> -> vector<8x128xf32>
    %60 = arith.subf %47, %59 : vector<8x128xf32>
    %61 = math.exp %60 : vector<8x128xf32>
    %cst_22 = arith.constant dense<0.000000e+00> : vector<8x8xf32>
    %62 = tpu.matmul %61, %48, %cst_22 {dimension_numbers = #tpu.dot_dimension_numbers<[1], [0], [0], [1], [0, 0, 1, 1], [], []>} : vector<8x128xf32>, vector<128x8xf32>, vector<8x8xf32> -> vector<8x8xf32>
    %63 = vector.shape_cast %51 : vector<8x1xf32> to vector<8x1xf32>
    %64 = vector.broadcast %63 : vector<8x1xf32> to vector<8x4xf32>
    %65 = vector.shape_cast %54 : vector<8x1xf32> to vector<8x1xf32>
    %66 = vector.broadcast %65 : vector<8x1xf32> to vector<8x4xf32>
    %67 = tpu.concatenate %64, %66 in 1 : vector<8x4xf32>, vector<8x4xf32> -> vector<8x8xf32>
    %68 = math.log %62 : vector<8x8xf32>
    %69 = arith.addf %68, %67 : vector<8x8xf32>
    %70 = vector.extract_strided_slice %69 {offsets = [0, 0], sizes = [8, 4], strides = [1, 1]} : vector<8x8xf32> to vector<8x4xf32>
    %71 = vector.extract_strided_slice %69 {offsets = [0, 4], sizes = [8, 4], strides = [1, 1]} : vector<8x8xf32> to vector<8x4xf32>
    %72 = arith.maximumf %70, %71 : vector<8x4xf32>
    %73 = arith.subf %70, %72 : vector<8x4xf32>
    %74 = math.exp %73 : vector<8x4xf32>
    %75 = arith.subf %71, %72 : vector<8x4xf32>
    %76 = math.exp %75 : vector<8x4xf32>
    %77 = arith.addf %74, %76 : vector<8x4xf32>
    %78 = math.log %77 : vector<8x4xf32>
    %79 = arith.addf %78, %72 : vector<8x4xf32>
    %c0_23 = arith.constant 0 : index
    %c0_24 = arith.constant 0 : index
    %80 = vector.load %arg8[%c0_23, %c0_24] : memref<8x4xf32, #tpu.memory_space<vmem>>, vector<8x4xf32>
    tpu.vector_store %arg8[%c0_23, %c0_24], %79 {strides = array<i32>} : memref<8x4xf32, #tpu.memory_space<vmem>>, vector<8x4xf32>,
    return
  }
  func.func @transform_0(%arg0: i32) -> (i32, i32) {
    %c0_i32 = arith.constant 0 : i32
    %c0_i32_0 = arith.constant 0 : i32
    return %arg0, %c0_i32 : i32, i32
  }
  func.func @transform_1(%arg0: i32) -> (i32, i32) {
    %c0_i32 = arith.constant 0 : i32
    %c0_i32_0 = arith.constant 0 : i32
    %c0_i32_1 = arith.constant 0 : i32
    return %c0_i32, %c0_i32_0 : i32, i32
  }
  func.func @transform_2(%arg0: i32) -> (i32, i32) {
    %c0_i32 = arith.constant 0 : i32
    %c0_i32_0 = arith.constant 0 : i32
    %c0_i32_1 = arith.constant 0 : i32
    return %c0_i32, %c0_i32_0 : i32, i32
  }
  func.func @transform_3(%arg0: i32) -> (i32, i32) {
    %c0_i32 = arith.constant 0 : i32
    %c0_i32_0 = arith.constant 0 : i32
    %c0_i32_1 = arith.constant 0 : i32
    return %c0_i32, %c0_i32_0 : i32, i32
  }
  func.func @transform_4(%arg0: i32) -> (i32, i32) {
    %c0_i32 = arith.constant 0 : i32
    %c0_i32_0 = arith.constant 0 : i32
    %c0_i32_1 = arith.constant 0 : i32
    return %c0_i32, %c0_i32_0 : i32, i32
  }
  func.func @transform_5(%arg0: i32) -> (i32, i32) {
    %c0_i32 = arith.constant 0 : i32
    %c0_i32_0 = arith.constant 0 : i32
    %c0_i32_1 = arith.constant 0 : i32
    return %c0_i32, %c0_i32_0 : i32, i32
  }
  func.func @transform_6(%arg0: i32) -> (i32, i32) {
    %c0_i32 = arith.constant 0 : i32
    %c0_i32_0 = arith.constant 0 : i32
    %c0_i32_1 = arith.constant 0 : i32
    return %c0_i32, %c0_i32_0 : i32, i32
  }
  func.func @transform_7(%arg0: i32) -> (i32, i32) {
    %c0_i32 = arith.constant 0 : i32
    %c0_i32_0 = arith.constant 0 : i32
    return %arg0, %c0_i32 : i32, i32
  }
}

</mosaic_0001>

<llo_original>
// kernel: rat_spn_forward.1
$region0: #{rat_spn_forward.1}
  #allocation0 [shape = 'u32[]', space=smem, size = 0x4, offset = 0x4, fixed_abs, tag = 'smem constant byte address 0x4 - core index']
  #allocation1 [shape = 'u32[72,128]{1,0:T(1,128)}', space=vmem, size = 0x9000, scoped, tag = 'internal scratch']
  %s0 = inlined_call_operand.vmem [shape: f32[8,16], index: 0, kind: input, shape index: {}]
  %s1 = inlined_call_operand.vmem [shape: f32[16,256], index: 1, kind: input, shape index: {}]
  %s2 = inlined_call_operand.vmem [shape: f32[16,256], index: 2, kind: input, shape index: {}]
  %s3 = inlined_call_operand.vmem [shape: f32[1,256], index: 3, kind: input, shape index: {}]
  %s4 = inlined_call_operand.vmem [shape: f32[256,32], index: 4, kind: input, shape index: {}]
  %s5 = inlined_call_operand.vmem [shape: f32[32,128], index: 5, kind: input, shape index: {}]
  %s6 = inlined_call_operand.vmem [shape: f32[128,8], index: 6, kind: input, shape index: {}]
  %s7 = inlined_call_operand.vmem [shape: f32[8,4], index: 7, kind: output, shape index: {}]
  %s8 = sld [smem:[#allocation0]]
  $region38: #{rat_spn_forward.1} parent=0
    _
  %s10 = ssub.s32 1, %s8
  %s11 = scalar_select 0, %s10, %s8
  // Predicated region
  $region2: #{rat_spn_forward.1} parent=0 // pred_check
    _
  $region3: #{rat_spn_forward.1} parent=0 // pred_check_branch
    %13 = sbr.rel (0) target = $region5
  $region4: #{rat_spn_forward.1} parent=0 // pred_region
    _
  $region5: #{rat_spn_forward.1} parent=0 // pred_fallthru
    _
  // Predicated region
  $region6: #{rat_spn_forward.1} parent=0 // pred_check
    _
  $region7: #{rat_spn_forward.1} parent=0 // pred_check_branch
    %15 = sbr.rel (0) target = $region9
  $region8: #{rat_spn_forward.1} parent=0 // pred_region
    _
  $region9: #{rat_spn_forward.1} parent=0 // pred_fallthru
    _
  // Predicated region
  $region10: #{rat_spn_forward.1} parent=0 // pred_check
    _
  $region11: #{rat_spn_forward.1} parent=0 // pred_check_branch
    %17 = sbr.rel (0) target = $region13
  $region12: #{rat_spn_forward.1} parent=0 // pred_region
    _
  $region13: #{rat_spn_forward.1} parent=0 // pred_fallthru
    _
  // Predicated region
  $region14: #{rat_spn_forward.1} parent=0 // pred_check
    _
  $region15: #{rat_spn_forward.1} parent=0 // pred_check_branch
    %19 = sbr.rel (0) target = $region17
  $region16: #{rat_spn_forward.1} parent=0 // pred_region
    _
  $region17: #{rat_spn_forward.1} parent=0 // pred_fallthru
    _
  // Predicated region
  $region18: #{rat_spn_forward.1} parent=0 // pred_check
    _
  $region19: #{rat_spn_forward.1} parent=0 // pred_check_branch
    %21 = sbr.rel (0) target = $region21
  $region20: #{rat_spn_forward.1} parent=0 // pred_region
    _
  $region21: #{rat_spn_forward.1} parent=0 // pred_fallthru
    _
  // Predicated region
  $region22: #{rat_spn_forward.1} parent=0 // pred_check
    _
  $region23: #{rat_spn_forward.1} parent=0 // pred_check_branch
    %23 = sbr.rel (0) target = $region25
  $region24: #{rat_spn_forward.1} parent=0 // pred_region
    _
  $region25: #{rat_spn_forward.1} parent=0 // pred_fallthru
    _
  // Predicated region
  $region26: #{rat_spn_forward.1} parent=0 // pred_check
    _
  $region27: #{rat_spn_forward.1} parent=0 // pred_check_branch
    %25 = sbr.rel (0) target = $region29
  $region28: #{rat_spn_forward.1} parent=0 // pred_region
    _
  $region29: #{rat_spn_forward.1} parent=0 // pred_fallthru
    _
  %v26 = vld [vmem:[%s0] sm:$0xff]
  %v27 = vmul.f32 %v26, %v26
  %v28 = vld [vmem:[%s1] sm:$0xff]
  %v29 = vld [vmem:[%s1 + $0x8] sm:$0xff]
  %v30 = vld [vmem:[%s1 + $0x10] sm:$0xff]
  %v31 = vld [vmem:[%s1 + $0x18] sm:$0xff]
  %vm32 = vcmask 130048
  %v34 = vsel %vm32, %v26, 0
  %36 = vmatpush.msra.mxu0 0.0
  %37 = vmatpush.msra.mxu0 0.0
  %38 = vmatpush.msra.mxu0 0.0
  %39 = vmatpush.msra.mxu0 0.0
  %40 = vmatpush.msra.mxu0 0.0
  %41 = vmatpush.msra.mxu0 0.0
  %42 = vmatpush.msra.mxu0 0.0
  %43 = vmatpush.msra.mxu0 0.0
  %44 = vmatpush.msra.mxu0 0.0
  %45 = vmatpush.msra.mxu0 0.0
  %46 = vmatpush.msra.mxu0 0.0
  %47 = vmatpush.msra.mxu0 0.0
  %48 = vmatpush.msra.mxu0 0.0
  %49 = vmatpush.msra.mxu0 0.0
  %50 = vmatpush.msra.mxu0 %v30
  %51 = vmatpush.msra.mxu0 %v28
  %52 = vmatmul.f32.gmra.mxu0 %v34
  %v53 = vpop.f32.mrf.mxu0
  %v54 = vadd.f32 0.0, %v53
  %55 = vdwg.mxu0
  %56 = vmatpush.msra.mxu0 0.0
  %57 = vmatpush.msra.mxu0 0.0
  %58 = vmatpush.msra.mxu0 0.0
  %59 = vmatpush.msra.mxu0 0.0
  %60 = vmatpush.msra.mxu0 0.0
  %61 = vmatpush.msra.mxu0 0.0
  %62 = vmatpush.msra.mxu0 0.0
  %63 = vmatpush.msra.mxu0 0.0
  %64 = vmatpush.msra.mxu0 0.0
  %65 = vmatpush.msra.mxu0 0.0
  %66 = vmatpush.msra.mxu0 0.0
  %67 = vmatpush.msra.mxu0 0.0
  %68 = vmatpush.msra.mxu0 0.0
  %69 = vmatpush.msra.mxu0 0.0
  %70 = vmatpush.msra.mxu0 %v31
  %71 = vmatpush.msra.mxu0 %v29
  %72 = vmatmul.f32.gmra.mxu0 %v34
  %v73 = vpop.f32.mrf.mxu0
  %v74 = vadd.f32 0.0, %v73
  %75 = vdwg.mxu0
  %v76 = vld [vmem:[%s2] sm:$0xff]
  %v77 = vld [vmem:[%s2 + $0x8] sm:$0xff]
  %v78 = vld [vmem:[%s2 + $0x10] sm:$0xff]
  %v79 = vld [vmem:[%s2 + $0x18] sm:$0xff]
  %v81 = vsel %vm32, %v27, 0
  %83 = vmatpush.msra.mxu0 0.0
  %84 = vmatpush.msra.mxu0 0.0
  %85 = vmatpush.msra.mxu0 0.0
  %86 = vmatpush.msra.mxu0 0.0
  %87 = vmatpush.msra.mxu0 0.0
  %88 = vmatpush.msra.mxu0 0.0
  %89 = vmatpush.msra.mxu0 0.0
  %90 = vmatpush.msra.mxu0 0.0
  %91 = vmatpush.msra.mxu0 0.0
  %92 = vmatpush.msra.mxu0 0.0
  %93 = vmatpush.msra.mxu0 0.0
  %94 = vmatpush.msra.mxu0 0.0
  %95 = vmatpush.msra.mxu0 0.0
  %96 = vmatpush.msra.mxu0 0.0
  %97 = vmatpush.msra.mxu0 %v78
  %98 = vmatpush.msra.mxu0 %v76
  %99 = vmatmul.f32.gmra.mxu0 %v81
  %v100 = vpop.f32.mrf.mxu0
  %v101 = vadd.f32 0.0, %v100
  %102 = vdwg.mxu0
  %103 = vmatpush.msra.mxu0 0.0
  %104 = vmatpush.msra.mxu0 0.0
  %105 = vmatpush.msra.mxu0 0.0
  %106 = vmatpush.msra.mxu0 0.0
  %107 = vmatpush.msra.mxu0 0.0
  %108 = vmatpush.msra.mxu0 0.0
  %109 = vmatpush.msra.mxu0 0.0
  %110 = vmatpush.msra.mxu0 0.0
  %111 = vmatpush.msra.mxu0 0.0
  %112 = vmatpush.msra.mxu0 0.0
  %113 = vmatpush.msra.mxu0 0.0
  %114 = vmatpush.msra.mxu0 0.0
  %115 = vmatpush.msra.mxu0 0.0
  %116 = vmatpush.msra.mxu0 0.0
  %117 = vmatpush.msra.mxu0 %v79
  %118 = vmatpush.msra.mxu0 %v77
  %119 = vmatmul.f32.gmra.mxu0 %v81
  %v120 = vpop.f32.mrf.mxu0
  %v121 = vadd.f32 0.0, %v120
  %122 = vdwg.mxu0
  %v123 = vsub.f32 %v54, %v101
  %v124 = vsub.f32 %v74, %v121
  %v125 = vld [vmem:[%s3] sm:$0x3]
  %v127 = vperm.slane %v125, 0
  %v128 = vperm.slane %v125, 1
  %v131 = vadd.f32 %v123, %v127
  %v132 = vadd.f32 %v124, %v128
  %v133 = vld [vmem:[%s4] sm:$0xff]
  %v134 = vld [vmem:[%s4 + $0x8] sm:$0xff]
  %v135 = vld [vmem:[%s4 + $0x10] sm:$0xff]
  %v136 = vld [vmem:[%s4 + $0x18] sm:$0xff]
  %v137 = vld [vmem:[%s4 + $0x20] sm:$0xff]
  %v138 = vld [vmem:[%s4 + $0x28] sm:$0xff]
  %v139 = vld [vmem:[%s4 + $0x30] sm:$0xff]
  %v140 = vld [vmem:[%s4 + $0x38] sm:$0xff]
  %v141 = vld [vmem:[%s4 + $0x40] sm:$0xff]
  %v142 = vld [vmem:[%s4 + $0x48] sm:$0xff]
  %v143 = vld [vmem:[%s4 + $0x50] sm:$0xff]
  %v144 = vld [vmem:[%s4 + $0x58] sm:$0xff]
  %v145 = vld [vmem:[%s4 + $0x60] sm:$0xff]
  %v146 = vld [vmem:[%s4 + $0x68] sm:$0xff]
  %v147 = vld [vmem:[%s4 + $0x70] sm:$0xff]
  %v148 = vld [vmem:[%s4 + $0x78] sm:$0xff]
  %v149 = vld [vmem:[%s4 + $0x80] sm:$0xff]
  %v150 = vld [vmem:[%s4 + $0x88] sm:$0xff]
  %v151 = vld [vmem:[%s4 + $0x90] sm:$0xff]
  %v152 = vld [vmem:[%s4 + $0x98] sm:$0xff]
  %v153 = vld [vmem:[%s4 + $0xa0] sm:$0xff]
  %v154 = vld [vmem:[%s4 + $0xa8] sm:$0xff]
  %v155 = vld [vmem:[%s4 + $0xb0] sm:$0xff]
  %v156 = vld [vmem:[%s4 + $0xb8] sm:$0xff]
  %v157 = vld [vmem:[%s4 + $0xc0] sm:$0xff]
  %v158 = vld [vmem:[%s4 + $0xc8] sm:$0xff]
  %v159 = vld [vmem:[%s4 + $0xd0] sm:$0xff]
  %v160 = vld [vmem:[%s4 + $0xd8] sm:$0xff]
  %v161 = vld [vmem:[%s4 + $0xe0] sm:$0xff]
  %v162 = vld [vmem:[%s4 + $0xe8] sm:$0xff]
  %v163 = vld [vmem:[%s4 + $0xf0] sm:$0xff]
  %v164 = vld [vmem:[%s4 + $0xf8] sm:$0xff]
  %vm165 = vcmask 523264
  %v166 = vsel %vm165, %v131, -inf
  %167 = vmax.xlane.f32.xlu0 %v166
  %v168 = vpop.xlane.xlu0 %167
  %vm169 = vcmask 1048064
  %v170 = vsel %vm169, %v131, -inf
  %171 = vmax.xlane.f32.xlu0 %v170
  %v172 = vpop.xlane.xlu0 %171
  %v173 = vsel %vm165, %v132, -inf
  %174 = vmax.xlane.f32.xlu0 %v173
  %v175 = vpop.xlane.xlu0 %174
  %v176 = vsel %vm169, %v132, -inf
  %177 = vmax.xlane.f32.xlu0 %v176
  %v178 = vpop.xlane.xlu0 %177
  %v179 = vsel %vm165, %v168, %v172
  %v180 = vsel %vm165, %v175, %v178
  %v181 = vsub.f32 %v131, %v179
  %v182 = vsub.f32 %v132, %v180
  %v183 = vmul.f32 %v181, 1.442695
  %v184 = vpow.pop %v183
  %v185 = vmul.f32 %v182, 1.442695
  %v186 = vpow.pop %v185
  %187 = vmatpush.msra.mxu0 %v148
  %188 = vmatpush.msra.mxu0 %v147
  %189 = vmatpush.msra.mxu0 %v146
  %190 = vmatpush.msra.mxu0 %v145
  %191 = vmatpush.msra.mxu0 %v144
  %192 = vmatpush.msra.mxu0 %v143
  %193 = vmatpush.msra.mxu0 %v142
  %194 = vmatpush.msra.mxu0 %v141
  %195 = vmatpush.msra.mxu0 %v140
  %196 = vmatpush.msra.mxu0 %v139
  %197 = vmatpush.msra.mxu0 %v138
  %198 = vmatpush.msra.mxu0 %v137
  %199 = vmatpush.msra.mxu0 %v136
  %200 = vmatpush.msra.mxu0 %v135
  %201 = vmatpush.msra.mxu0 %v134
  %202 = vmatpush.msra.mxu0 %v133
  %203 = vmatmul.f32.gmra.mxu0 %v184
  %v204 = vpop.f32.mrf.mxu0
  %v205 = vadd.f32 0.0, %v204
  %206 = vdwg.mxu0
  %207 = vmatpush.msra.mxu0 %v164
  %208 = vmatpush.msra.mxu0 %v163
  %209 = vmatpush.msra.mxu0 %v162
  %210 = vmatpush.msra.mxu0 %v161
  %211 = vmatpush.msra.mxu0 %v160
  %212 = vmatpush.msra.mxu0 %v159
  %213 = vmatpush.msra.mxu0 %v158
  %214 = vmatpush.msra.mxu0 %v157
  %215 = vmatpush.msra.mxu0 %v156
  %216 = vmatpush.msra.mxu0 %v155
  %217 = vmatpush.msra.mxu0 %v154
  %218 = vmatpush.msra.mxu0 %v153
  %219 = vmatpush.msra.mxu0 %v152
  %220 = vmatpush.msra.mxu0 %v151
  %221 = vmatpush.msra.mxu0 %v150
  %222 = vmatpush.msra.mxu0 %v149
  %223 = vmatmul.f32.gmra.mxu0 %v186
  %v224 = vpop.f32.mrf.mxu0
  %v225 = vadd.f32 %v205, %v224
  %226 = vdwg.mxu0
  %vm227 = vcmask 64512
  %v228 = vsel %vm227, %v168, %v172
  %v229 = vsel %vm32, %v228, %v175
  %vm230 = vcmask 195584
  %v231 = vsel %vm230, %v229, %v178
  %v232 = vlog2.pop %v225
  %v233 = vmul.f32 %v232, 0.6931472
  %v234 = vadd.f32 %v233, %v231
  %v235 = vld [vmem:[%s5] sm:$0xff]
  %v236 = vld [vmem:[%s5 + $0x8] sm:$0xff]
  %v237 = vld [vmem:[%s5 + $0x10] sm:$0xff]
  %v238 = vld [vmem:[%s5 + $0x18] sm:$0xff]
  %vm239 = vcmask 261120
  %v241 = vsel %vm239, %v234, 0
  %243 = vmatpush.msra.mxu0 0.0
  %244 = vmatpush.msra.mxu0 0.0
  %245 = vmatpush.msra.mxu0 0.0
  %246 = vmatpush.msra.mxu0 0.0
  %247 = vmatpush.msra.mxu0 0.0
  %248 = vmatpush.msra.mxu0 0.0
  %249 = vmatpush.msra.mxu0 0.0
  %250 = vmatpush.msra.mxu0 0.0
  %251 = vmatpush.msra.mxu0 0.0
  %252 = vmatpush.msra.mxu0 0.0
  %253 = vmatpush.msra.mxu0 0.0
  %254 = vmatpush.msra.mxu0 0.0
  %255 = vmatpush.msra.mxu0 %v238
  %256 = vmatpush.msra.mxu0 %v237
  %257 = vmatpush.msra.mxu0 %v236
  %258 = vmatpush.msra.mxu0 %v235
  %259 = vmatmul.f32.gmra.mxu0 %v241
  %v260 = vpop.f32.mrf.mxu0
  %v261 = vadd.f32 0.0, %v260
  %262 = vdwg.mxu0
  %v263 = vld [vmem:[%s6] sm:$0xff]
  %v264 = vld [vmem:[%s6 + $0x8] sm:$0xff]
  %v265 = vld [vmem:[%s6 + $0x10] sm:$0xff]
  %v266 = vld [vmem:[%s6 + $0x18] sm:$0xff]
  %v267 = vld [vmem:[%s6 + $0x20] sm:$0xff]
  %v268 = vld [vmem:[%s6 + $0x28] sm:$0xff]
  %v269 = vld [vmem:[%s6 + $0x30] sm:$0xff]
  %v270 = vld [vmem:[%s6 + $0x38] sm:$0xff]
  %v271 = vld [vmem:[%s6 + $0x40] sm:$0xff]
  %v272 = vld [vmem:[%s6 + $0x48] sm:$0xff]
  %v273 = vld [vmem:[%s6 + $0x50] sm:$0xff]
  %v274 = vld [vmem:[%s6 + $0x58] sm:$0xff]
  %v275 = vld [vmem:[%s6 + $0x60] sm:$0xff]
  %v276 = vld [vmem:[%s6 + $0x68] sm:$0xff]
  %v277 = vld [vmem:[%s6 + $0x70] sm:$0xff]
  %v278 = vld [vmem:[%s6 + $0x78] sm:$0xff]
  %v279 = vsel %vm165, %v261, -inf
  %280 = vmax.xlane.f32.xlu0 %v279
  %v281 = vpop.xlane.xlu0 %280
  %v282 = vsel %vm169, %v261, -inf
  %283 = vmax.xlane.f32.xlu0 %v282
  %v284 = vpop.xlane.xlu0 %283
  %v285 = vsel %vm165, %v281, %v284
  %v286 = vsub.f32 %v261, %v285
  %v287 = vmul.f32 %v286, 1.442695
  %v288 = vpow.pop %v287
  %289 = vmatpush.msra.mxu0 %v278
  %290 = vmatpush.msra.mxu0 %v277
  %291 = vmatpush.msra.mxu0 %v276
  %292 = vmatpush.msra.mxu0 %v275
  %293 = vmatpush.msra.mxu0 %v274
  %294 = vmatpush.msra.mxu0 %v273
  %295 = vmatpush.msra.mxu0 %v272
  %296 = vmatpush.msra.mxu0 %v271
  %297 = vmatpush.msra.mxu0 %v270
  %298 = vmatpush.msra.mxu0 %v269
  %299 = vmatpush.msra.mxu0 %v268
  %300 = vmatpush.msra.mxu0 %v267
  %301 = vmatpush.msra.mxu0 %v266
  %302 = vmatpush.msra.mxu0 %v265
  %303 = vmatpush.msra.mxu0 %v264
  %304 = vmatpush.msra.mxu0 %v263
  %305 = vmatmul.f32.gmra.mxu0 %v288
  %v306 = vpop.f32.mrf.mxu0
  %v307 = vadd.f32 0.0, %v306
  %308 = vdwg.mxu0
  %vm309 = vcmask 31744
  %v310 = vsel %vm309, %v281, %v284
  %v311 = vlog2.pop %v307
  %v312 = vmul.f32 %v311, 0.6931472
  %v313 = vadd.f32 %v312, %v310
  %315 = vrot.lane.b32.xlu0 %v313, 124
  %v316 = vpop.permute.xlu0 %315
  %v318 = vmax.f32 %v313, %v316
  %v319 = vsub.f32 %v313, %v318
  %v320 = vmul.f32 %v319, 1.442695
  %v321 = vpow.pop %v320
  %323 = vrot.lane.b32.xlu0 %v318, 4
  %v324 = vpop.permute.xlu0 %323
  %v326 = vsub.f32 %v313, %v324
  %v327 = vmul.f32 %v326, 1.442695
  %v328 = vpow.pop %v327
  %330 = vrot.lane.b32.xlu0 %v328, 124
  %v331 = vpop.permute.xlu0 %330
  %v333 = vadd.f32 %v321, %v331
  %v334 = vlog2.pop %v333
  %v335 = vmul.f32 %v334, 0.6931472
  %v336 = vadd.f32 %v335, %v318
  %337 = vst.msk [vmem:[%s7] sm:$0xff] %vm309, %v336
  // Predicated region
  $region30: #{rat_spn_forward.1} parent=0 // pred_check
    _
  $region31: #{rat_spn_forward.1} parent=0 // pred_check_branch
    %339 = sbr.rel (0) target = $region33
  $region32: #{rat_spn_forward.1} parent=0 // pred_region
    _
  $region33: #{rat_spn_forward.1} parent=0 // pred_fallthru
    _
  // Predicated region
  $region34: #{rat_spn_forward.1} parent=0 // pred_check
    _
  $region35: #{rat_spn_forward.1} parent=0 // pred_check_branch
    %341 = sbr.rel (0) target = $region37
  $region36: #{rat_spn_forward.1} parent=0 // pred_region
    _
  $region37: #{rat_spn_forward.1} parent=0 // pred_fallthru
    _

</llo_original>
